<compile_context>
chip_gen: v7x
topology: tpu7x:2x2x1
jax: 0.10.0
libtpu: 0.0.40
codegen_flags: <defaults>
</compile_context>

<pallas_src>
import functools

import jax
import jax.numpy as jnp
from jax.experimental import pallas as pl
from jax.experimental.pallas import tpu as pltpu

LANE = 128
ACC_ROWS = 64                  # accumulator height & row-rounding unit (multiple of 8/16/32 packing)
TARGET_STREAM_BYTES = 8 << 20  # combined (x + target) HBM bytes per block (~4 MiB per input)


def _round_up(n: int, m: int) -> int:
    return (n + m - 1) // m * m


def _num_tensorcores() -> int:
    """v7x packs 2 TensorCores per chip; v5e/v6e expose 1 per device."""
    try:
        kind = jax.devices()[0].device_kind
    except Exception:
        return 1
    return 2 if "v7" in str(kind).lower() else 1


def _mse_partial_kernel(x_ref, t_ref, out_ref, acc_ref, *,
                        rows, tile, needs_mask, multi_core):
    """Accumulates sum((x - t)^2) for this core's block range into out_ref[0, 0]."""
    if multi_core:
        c = pl.program_id(0)       # TensorCore index (CORE_PARALLEL)
        i = pl.program_id(1)       # block index within this core (arbitrary/reduction)
        bpc = pl.num_programs(1)
    else:
        c = 0
        i = pl.program_id(0)
        bpc = pl.num_programs(0)

    @pl.when(i == 0)
    def _():
        acc_ref[...] = jnp.zeros_like(acc_ref)

    # Cast per-tile in VMEM (free on the VPU) — inputs stay in native dtype in HBM.
    d = x_ref[...].astype(jnp.float32) - t_ref[...].astype(jnp.float32)
    sq = d * d

    def accumulate(vals):
        # Fold the block onto ACC_ROWS independent accumulator rows: pure vreg-aligned
        # VPU adds in the steady state; no cross-lane traffic until the epilogue.
        acc_ref[...] += vals.reshape(tile // ACC_ROWS, ACC_ROWS, LANE).sum(axis=0)

    if needs_mask:
        row0 = (c * bpc + i) * tile   # first (virtual) row of this global block

        @pl.when(row0 + tile <= rows)
        def _():
            accumulate(sq)

        @pl.when(row0 + tile > rows)
        def _():
            local_row = jax.lax.broadcasted_iota(jnp.int32, (tile, LANE), 0)
            accumulate(jnp.where(row0 + local_row < rows, sq, 0.0))
    else:
        accumulate(sq)

    @pl.when(i == bpc - 1)
    def _():
        # Single cross-lane/sublane reduce per core, once, in the epilogue.
        out_ref[0, 0] = jnp.sum(acc_ref[...])


def content_loss_forward(x: jax.Array, target: jax.Array):
    """Returns (input_passthrough, mse_loss_scalar) — mirrors ContentLoss.forward."""
    assert x.shape == target.shape, "mse_loss here assumes matching shapes (no broadcast)"
    target = jax.lax.stop_gradient(target)   # mirrors target.detach()
    n_total = x.size

    xf = x.reshape(-1)
    tf = target.reshape(-1)

    # Rare fallback: pad to a multiple of 128 so the lane-dense (rows, 128) view exists.
    # Typical NCHW feature-map element counts are already divisible by 128 -> no pad.
    # TODO(synk): handle the sub-128 element tail fully in-kernel (scalar-prefetched
    # valid count + lane mask) to avoid this extra HBM pass for odd element counts.
    lane_pad = (-n_total) % LANE
    if lane_pad:
        xf = jnp.pad(xf, (0, lane_pad))
        tf = jnp.pad(tf, (0, lane_pad))
    rows = (n_total + lane_pad) // LANE
    x2d = xf.reshape(rows, LANE)
    t2d = tf.reshape(rows, LANE)

    # Size the block in BYTES (not a fixed row count), rounded to 64 rows so every
    # dtype's sublane packing (8/16/32) and the accumulator fold are satisfied.
    isx = int(jnp.dtype(x2d.dtype).itemsize)
    ist = int(jnp.dtype(t2d.dtype).itemsize)
    target_rows = max(ACC_ROWS, TARGET_STREAM_BYTES // (LANE * (isx + ist)))
    tile = max(ACC_ROWS,
               min(_round_up(rows, ACC_ROWS), _round_up(target_rows, ACC_ROWS)))

    total_blocks = pl.cdiv(rows, tile)
    num_cores = _num_tensorcores() if total_blocks > 1 else 1
    multi_core = num_cores > 1

    if multi_core:
        # v7x: real 2-TensorCore split via CORE_PARALLEL; each core owns its own
        # acc scratch and runs its full i = 0..bpc-1 range (init + epilogue per core).
        bpc = pl.cdiv(total_blocks, num_cores)
        grid = (num_cores, bpc)
        dims = (pltpu.CORE_PARALLEL, pltpu.ARBITRARY)
        needs_mask = (num_cores * bpc * tile) != rows

        def in_index_map(c, i):
            # Virtual out-of-range blocks are clamped onto the last real block; they
            # are fully masked in-kernel so the duplicated data contributes zero.
            return (jnp.minimum(c * bpc + i, total_blocks - 1), 0)

        out_index_map = lambda c, i: (c, 0)
    else:
        grid = (total_blocks,)
        dims = (pltpu.ARBITRARY,)
        needs_mask = (total_blocks * tile) != rows
        in_index_map = lambda i: (i, 0)
        out_index_map = lambda i: (0, 0)

    kernel = functools.partial(
        _mse_partial_kernel, rows=rows, tile=tile,
        needs_mask=needs_mask, multi_core=multi_core,
    )

    # Double-buffered native-dtype input blocks + headroom for scratch / internals.
    block_bytes = tile * LANE * (isx + ist)
    vmem_limit = int(2 * block_bytes) + (16 << 20)

    cost = pl.CostEstimate(
        flops=3 * n_total,
        transcendentals=0,
        bytes_accessed=n_total * (isx + ist) + num_cores * 4,
    )

    partials = pl.pallas_call(
        kernel,
        out_shape=jax.ShapeDtypeStruct((num_cores, 1), jnp.float32),
        grid_spec=pltpu.PrefetchScalarGridSpec(
            num_scalar_prefetch=0,
            grid=grid,
            in_specs=[
                pl.BlockSpec((tile, LANE), in_index_map),
                pl.BlockSpec((tile, LANE), in_index_map),
            ],
            out_specs=pl.BlockSpec((1, 1), out_index_map, memory_space=pltpu.SMEM),
            scratch_shapes=[pltpu.VMEM((ACC_ROWS, LANE), jnp.float32)],
        ),
        compiler_params=pltpu.CompilerParams(
            dimension_semantics=dims,
            vmem_limit_bytes=vmem_limit,
        ),
        cost_estimate=cost,
    )(x2d, t2d)

    loss = jnp.sum(partials) / jnp.float32(n_total)
    # Module returns the input unchanged; the loss is the side value it stores.
    return x, loss


if __name__ == "__main__":
    key = jax.random.PRNGKey(0)
    k_x, k_t, k_x2, k_t2 = jax.random.split(key, 4)

    # NCHW, small shapes: batch=2, channels=4, spatial=16x16 (128-divisible path).
    x = jax.random.normal(k_x, (2, 4, 16, 16), dtype=jnp.float32)
    target = jax.random.normal(k_t, (2, 4, 16, 16), dtype=jnp.float32)

    out, loss = content_loss_forward(x, target)
    jax.block_until_ready((out, loss))
    ref_loss = jnp.mean((x - target) ** 2)
    assert jnp.allclose(loss, ref_loss, rtol=1e-5, atol=1e-6), (loss, ref_loss)
    assert jnp.array_equal(out, x)

    # Odd shape: exercises the lane-pad fallback + in-kernel row-tail mask path.
    x2 = jax.random.normal(k_x2, (1, 3, 37, 29), dtype=jnp.float32)
    t2 = jax.random.normal(k_t2, (1, 3, 37, 29), dtype=jnp.float32)
    out2, loss2 = content_loss_forward(x2, t2)
    jax.block_until_ready((out2, loss2))
    ref_loss2 = jnp.mean((x2 - t2) ** 2)
    assert jnp.allclose(loss2, ref_loss2, rtol=1e-5, atol=1e-6), (loss2, ref_loss2)
    assert jnp.array_equal(out2, x2)

    # bf16 path: native-dtype streaming with packing-safe (64-row) blocks.
    xb = jax.random.normal(k_x, (2, 4, 16, 16), dtype=jnp.bfloat16)
    tb = jax.random.normal(k_t, (2, 4, 16, 16), dtype=jnp.bfloat16)
    outb, lossb = content_loss_forward(xb, tb)
    jax.block_until_ready((outb, lossb))
    refb = jnp.mean((xb.astype(jnp.float32) - tb.astype(jnp.float32)) ** 2)
    assert jnp.allclose(lossb, refb, rtol=1e-3, atol=1e-3), (lossb, refb)
    assert jnp.array_equal(outb, xb)

    print("KERNEL_OK")
</pallas_src>

<mosaic_0001>
module attributes {stable_mosaic.version = 11 : i64} {
  func.func @_mse_partial_kernel(%arg0: i32, %arg1: memref<64x128xf32, #tpu.memory_space<vmem>>, %arg2: memref<64x128xf32, #tpu.memory_space<vmem>>, %arg3: memref<1x1xf32, #tpu.memory_space<smem>>, %arg4: memref<64x128xf32, #tpu.memory_space<vmem>>) attributes {dimension_semantics = [#tpu.dimension_semantics<arbitrary>], iteration_bounds = array<i64: 1>, scalar_prefetch = 0 : i64, scratch_operands = 1 : i64, tpu.core_type = #tpu.core_type<tc>, window_params = [{transform_indices = @transform_0, window_bounds = array<i64: 64, 128>}, {transform_indices = @transform_1, window_bounds = array<i64: 64, 128>}, {transform_indices = @transform_2, window_bounds = array<i64: 1, 1>}]} {
    %c0_i32 = arith.constant 0 : i32
    %0 = arith.cmpi eq, %arg0, %c0_i32 : i32
    %1 = arith.extui %0 : i1 to i32
    %c0_i32_0 = arith.constant 0 : i32
    %2 = arith.cmpi ne, %1, %c0_i32_0 : i32
    scf.if %2 {
      %cst = arith.constant 0.000000e+00 : f32
      %20 = vector.broadcast %cst : f32 to vector<64x128xf32>
      %c0_12 = arith.constant 0 : index
      %c0_13 = arith.constant 0 : index
      %21 = vector.load %arg4[%c0_12, %c0_13] : memref<64x128xf32, #tpu.memory_space<vmem>>, vector<64x128xf32>
      tpu.vector_store %arg4[%c0_12, %c0_13], %20 {strides = array<i32>} : memref<64x128xf32, #tpu.memory_space<vmem>>, vector<64x128xf32>,
    } else {
    }
    %c0 = arith.constant 0 : index
    %c0_1 = arith.constant 0 : index
    %3 = vector.load %arg1[%c0, %c0_1] : memref<64x128xf32, #tpu.memory_space<vmem>>, vector<64x128xf32>
    %c0_2 = arith.constant 0 : index
    %c0_3 = arith.constant 0 : index
    %4 = vector.load %arg2[%c0_2, %c0_3] : memref<64x128xf32, #tpu.memory_space<vmem>>, vector<64x128xf32>
    %5 = arith.subf %3, %4 : vector<64x128xf32>
    %6 = arith.mulf %5, %5 : vector<64x128xf32>
    %c0_i32_4 = arith.constant 0 : i32
    %7 = arith.addi %c0_i32_4, %arg0 : i32
    %c64_i32 = arith.constant 64 : i32
    %8 = arith.muli %7, %c64_i32 : i32
    %c64_i32_5 = arith.constant 64 : i32
    %9 = arith.addi %8, %c64_i32_5 : i32
    %c16_i32 = arith.constant 16 : i32
    %10 = arith.cmpi sle, %9, %c16_i32 : i32
    %11 = arith.extui %10 : i1 to i32
    %c0_i32_6 = arith.constant 0 : i32
    %12 = arith.cmpi ne, %11, %c0_i32_6 : i32
    scf.if %12 {
      %c0_12 = arith.constant 0 : index
      %c0_13 = arith.constant 0 : index
      %20 = vector.load %arg4[%c0_12, %c0_13] : memref<64x128xf32, #tpu.memory_space<vmem>>, vector<64x128xf32>
      %21 = vector.shape_cast %6 : vector<64x128xf32> to vector<1x64x128xf32>
      %cst = arith.constant dense<0.000000e+00> : vector<64x128xf32>
      %22 = vector.multi_reduction <add>, %21, %cst [0] : vector<1x64x128xf32> to vector<64x128xf32>
      %23 = arith.addf %20, %22 : vector<64x128xf32>
      %c0_14 = arith.constant 0 : index
      %c0_15 = arith.constant 0 : index
      %24 = vector.load %arg4[%c0_14, %c0_15] : memref<64x128xf32, #tpu.memory_space<vmem>>, vector<64x128xf32>
      tpu.vector_store %arg4[%c0_14, %c0_15], %23 {strides = array<i32>} : memref<64x128xf32, #tpu.memory_space<vmem>>, vector<64x128xf32>,
    } else {
    }
    %c64_i32_7 = arith.constant 64 : i32
    %13 = arith.addi %8, %c64_i32_7 : i32
    %c16_i32_8 = arith.constant 16 : i32
    %14 = arith.cmpi sgt, %13, %c16_i32_8 : i32
    %15 = arith.extui %14 : i1 to i32
    %c0_i32_9 = arith.constant 0 : i32
    %16 = arith.cmpi ne, %15, %c0_i32_9 : i32
    scf.if %16 {
      %20 = tpu.iota {dimensions = array<i32: 0>} : vector<64x128xi32>
      %21 = vector.broadcast %8 : i32 to vector<64x128xi32>
      %22 = arith.addi %21, %20 : vector<64x128xi32>
      %c16_i32_12 = arith.constant 16 : i32
      %23 = vector.broadcast %c16_i32_12 : i32 to vector<64x128xi32>
      %24 = arith.cmpi slt, %22, %23 : vector<64x128xi32>
      %cst = arith.constant 0.000000e+00 : f32
      %25 = vector.broadcast %cst : f32 to vector<64x128xf32>
      %26 = arith.select %24, %6, %25 : vector<64x128xi1>, vector<64x128xf32>
      %c0_13 = arith.constant 0 : index
      %c0_14 = arith.constant 0 : index
      %27 = vector.load %arg4[%c0_13, %c0_14] : memref<64x128xf32, #tpu.memory_space<vmem>>, vector<64x128xf32>
      %28 = vector.shape_cast %26 : vector<64x128xf32> to vector<1x64x128xf32>
      %cst_15 = arith.constant dense<0.000000e+00> : vector<64x128xf32>
      %29 = vector.multi_reduction <add>, %28, %cst_15 [0] : vector<1x64x128xf32> to vector<64x128xf32>
      %30 = arith.addf %27, %29 : vector<64x128xf32>
      %c0_16 = arith.constant 0 : index
      %c0_17 = arith.constant 0 : index
      %31 = vector.load %arg4[%c0_16, %c0_17] : memref<64x128xf32, #tpu.memory_space<vmem>>, vector<64x128xf32>
      tpu.vector_store %arg4[%c0_16, %c0_17], %30 {strides = array<i32>} : memref<64x128xf32, #tpu.memory_space<vmem>>, vector<64x128xf32>,
    } else {
    }
    %c0_i32_10 = arith.constant 0 : i32
    %17 = arith.cmpi eq, %arg0, %c0_i32_10 : i32
    %18 = arith.extui %17 : i1 to i32
    %c0_i32_11 = arith.constant 0 : i32
    %19 = arith.cmpi ne, %18, %c0_i32_11 : i32
    scf.if %19 {
      %c0_12 = arith.constant 0 : index
      %c0_13 = arith.constant 0 : index
      %20 = vector.load %arg4[%c0_12, %c0_13] : memref<64x128xf32, #tpu.memory_space<vmem>>, vector<64x128xf32>
      %21 = vector.shape_cast %20 : vector<64x128xf32> to vector<1x64x128xf32>
      %cst = arith.constant dense<0.000000e+00> : vector<1xf32>
      %22 = vector.multi_reduction <add>, %21, %cst [1, 2] : vector<1x64x128xf32> to vector<1xf32>
      %23 = vector.shape_cast %22 : vector<1xf32> to vector<1x1x1xf32>
      %24 = vector.extract %23[0, 0, 0] : f32 from vector<1x1x1xf32>
      %c0_14 = arith.constant 0 : index
      %c0_15 = arith.constant 0 : index
      %25 = memref.load %arg3[%c0_14, %c0_15] : memref<1x1xf32, #tpu.memory_space<smem>>
      memref.store %24, %arg3[%c0_14, %c0_15] : memref<1x1xf32, #tpu.memory_space<smem>>
    } else {
    }
    return
  }
  func.func @transform_0(%arg0: i32) -> (i32, i32) {
    %c0_i32 = arith.constant 0 : i32
    %c0_i32_0 = arith.constant 0 : i32
    return %arg0, %c0_i32 : i32, i32
  }
  func.func @transform_1(%arg0: i32) -> (i32, i32) {
    %c0_i32 = arith.constant 0 : i32
    %c0_i32_0 = arith.constant 0 : i32
    return %arg0, %c0_i32 : i32, i32
  }
  func.func @transform_2(%arg0: i32) -> (i32, i32) {
    %c0_i32 = arith.constant 0 : i32
    %c0_i32_0 = arith.constant 0 : i32
    %c0_i32_1 = arith.constant 0 : i32
    return %c0_i32, %c0_i32_0 : i32, i32
  }
}

</mosaic_0001>

<llo_original>
// kernel: tpu_custom_call.1
$region0: #{tpu_custom_call.1}
  #allocation0 [shape = 'u32[]', space=smem, size = 0x4, offset = 0x4, fixed_abs, tag = 'smem constant byte address 0x4 - core index']
  #allocation1 [shape = 'u32[144,128]{1,0:T(1,128)}', space=vmem, size = 0x12000, scoped, tag = 'internal scratch']
  #allocation2 [shape = 'f32[64,128]{1,0:T(8,128)}', space=vmem, size = 0x8000, scoped, tag = 'scratch operand']
  %s0 = inlined_call_operand.hbm [shape: f32[16,128], index: 0, kind: input, shape index: {}]
  %s1 = inlined_call_operand.hbm [shape: f32[16,128], index: 1, kind: input, shape index: {}]
  %s2 = inlined_call_operand.hbm [shape: f32[1,1], index: 2, kind: output, shape index: {}]
  %s3 = sld [smem:[#allocation0]]
  $region42: #{tpu_custom_call.1} parent=0
    _
  %s5 = ssub.s32 1, %s3
  %s6 = scalar_select 0, %s5, %s3
  $region1: #{tpu_custom_call.1} parent=0
    #allocation3 [shape = 'u8[32768]{0}', space=vmem, size = 0x8000, scoped, tag = 'input window, operand 0, single buffered']
    #allocation4 [shape = 's32[1]{0}', space=sflag, size = 0x4, scoped, tag = 'scoped memory for tpu_custom_call.1']
    #allocation5 [shape = 's32[1]{0}', space=sflag, size = 0x4, scoped, tag = 'scoped memory for tpu_custom_call.1']
    #allocation6 [shape = 'u8[32768]{0}', space=vmem, size = 0x8000, scoped, tag = 'input window, operand 1, single buffered']
    #allocation7 [shape = 's32[1]{0}', space=sflag, size = 0x4, scoped, tag = 'scoped memory for tpu_custom_call.1']
    #allocation8 [shape = 'u8[512]{0}', space=smem, size = 0x200, scoped, tag = 'output window, operand 0, single buffered']
    %7 = vsyncpa [#allocation4], 0
    %8 = vsyncpa [#allocation7], 0
    %9 = vsyncpa [#allocation5], 0
    // Predicated region
    $region2: #{tpu_custom_call.1} parent=1 // pred_check
      _
    $region3: #{tpu_custom_call.1} parent=1 // pred_check_branch
      %11 = sbr.rel (0) target = $region5
    $region4: #{tpu_custom_call.1} parent=1 // pred_region
      %s13 = ssub.s32 1024, 256
      %14 = vsyncadd [#allocation4], %s13
      %s15 = sshll.u32 [#allocation3], 4
      %s16 = int_to_ptr.vmem [resolvable:$true] %s15
      %21 = dma.hbm_to_vmem [thread:$0]  %s0, 256, %s16, [#allocation4], 128, 128, 8
    $region5: #{tpu_custom_call.1} parent=1 // pred_fallthru
      _
    // Predicated region
    $region6: #{tpu_custom_call.1} parent=1 // pred_check
      _
    $region7: #{tpu_custom_call.1} parent=1 // pred_check_branch
      %23 = sbr.rel (0) target = $region9
    $region8: #{tpu_custom_call.1} parent=1 // pred_region
      %s25 = ssub.s32 1024, 256
      %26 = vsyncadd [#allocation7], %s25
      %s27 = sshll.u32 [#allocation6], 4
      %s28 = int_to_ptr.vmem [resolvable:$true] %s27
      %33 = dma.hbm_to_vmem [thread:$0]  %s1, 256, %s28, [#allocation7], 128, 128, 8
    $region9: #{tpu_custom_call.1} parent=1 // pred_fallthru
      _
    // Predicated region
    $region10: #{tpu_custom_call.1} parent=1 // pred_check
      _
    $region11: #{tpu_custom_call.1} parent=1 // pred_check_branch
      %35 = sbr.rel (0) target = $region13
    $region12: #{tpu_custom_call.1} parent=1 // pred_region
      %36 = dma.done [#allocation4], 1024
    $region13: #{tpu_custom_call.1} parent=1 // pred_fallthru
      _
    // Predicated region
    $region14: #{tpu_custom_call.1} parent=1 // pred_check
      _
    $region15: #{tpu_custom_call.1} parent=1 // pred_check_branch
      %38 = sbr.rel (0) target = $region17
    $region16: #{tpu_custom_call.1} parent=1 // pred_region
      %39 = dma.done [#allocation7], 1024
    $region17: #{tpu_custom_call.1} parent=1 // pred_fallthru
      _
    %p40 = scmp.eq.s32.totalorder 0, 0
    // Predicated region
    $region18: #{tpu_custom_call.1} parent=1 // pred_check
      %p41 = pneg %p40
    $region19: #{tpu_custom_call.1} parent=1 // pred_check_branch
      %43 = sbr.rel (%p41) target = $region21
    $region20: #{tpu_custom_call.1} parent=1 // pred_region
      %44 = vst [vmem:[#allocation2] sm:$0xff] 0.0
      %45 = vst [vmem:[#allocation2 + $0x8] sm:$0xff] 0.0
      %46 = vst [vmem:[#allocation2 + $0x10] sm:$0xff] 0.0
      %47 = vst [vmem:[#allocation2 + $0x18] sm:$0xff] 0.0
      %48 = vst [vmem:[#allocation2 + $0x20] sm:$0xff] 0.0
      %49 = vst [vmem:[#allocation2 + $0x28] sm:$0xff] 0.0
      %50 = vst [vmem:[#allocation2 + $0x30] sm:$0xff] 0.0
      %51 = vst [vmem:[#allocation2 + $0x38] sm:$0xff] 0.0
    $region21: #{tpu_custom_call.1} parent=1 // pred_fallthru
      _
    %v52 = vld [vmem:[#allocation3] sm:$0xff]
    %v53 = vld [vmem:[#allocation3 + $0x8] sm:$0xff]
    %v54 = vld [vmem:[#allocation3 + $0x10] sm:$0xff]
    %v55 = vld [vmem:[#allocation3 + $0x18] sm:$0xff]
    %v56 = vld [vmem:[#allocation3 + $0x20] sm:$0xff]
    %v57 = vld [vmem:[#allocation3 + $0x28] sm:$0xff]
    %v58 = vld [vmem:[#allocation3 + $0x30] sm:$0xff]
    %v59 = vld [vmem:[#allocation3 + $0x38] sm:$0xff]
    %v60 = vld [vmem:[#allocation6] sm:$0xff]
    %v61 = vld [vmem:[#allocation6 + $0x8] sm:$0xff]
    %v62 = vld [vmem:[#allocation6 + $0x10] sm:$0xff]
    %v63 = vld [vmem:[#allocation6 + $0x18] sm:$0xff]
    %v64 = vld [vmem:[#allocation6 + $0x20] sm:$0xff]
    %v65 = vld [vmem:[#allocation6 + $0x28] sm:$0xff]
    %v66 = vld [vmem:[#allocation6 + $0x30] sm:$0xff]
    %v67 = vld [vmem:[#allocation6 + $0x38] sm:$0xff]
    %v68 = vsub.f32 %v52, %v60
    %v69 = vsub.f32 %v53, %v61
    %v70 = vsub.f32 %v54, %v62
    %v71 = vsub.f32 %v55, %v63
    %v72 = vsub.f32 %v56, %v64
    %v73 = vsub.f32 %v57, %v65
    %v74 = vsub.f32 %v58, %v66
    %v75 = vsub.f32 %v59, %v67
    %v76 = vmul.f32 %v68, %v68
    %v77 = vmul.f32 %v69, %v69
    %v78 = vmul.f32 %v70, %v70
    %v79 = vmul.f32 %v71, %v71
    %v80 = vmul.f32 %v72, %v72
    %v81 = vmul.f32 %v73, %v73
    %v82 = vmul.f32 %v74, %v74
    %v83 = vmul.f32 %v75, %v75
    %s84 = smul.u32 0, 64
    %s85 = sadd.s32 %s84, 64
    %p86 = scmp.le.s32.totalorder %s85, 16
    // Predicated region
    $region22: #{tpu_custom_call.1} parent=1 // pred_check
      %p87 = pneg %p86
    $region23: #{tpu_custom_call.1} parent=1 // pred_check_branch
      %89 = sbr.rel (%p87) target = $region25
    $region24: #{tpu_custom_call.1} parent=1 // pred_region
      %v90 = vld [vmem:[#allocation2] sm:$0xff]
      %v91 = vld [vmem:[#allocation2 + $0x8] sm:$0xff]
      %v92 = vld [vmem:[#allocation2 + $0x10] sm:$0xff]
      %v93 = vld [vmem:[#allocation2 + $0x18] sm:$0xff]
      %v94 = vld [vmem:[#allocation2 + $0x20] sm:$0xff]
      %v95 = vld [vmem:[#allocation2 + $0x28] sm:$0xff]
      %v96 = vld [vmem:[#allocation2 + $0x30] sm:$0xff]
      %v97 = vld [vmem:[#allocation2 + $0x38] sm:$0xff]
      %v98 = vadd.f32 %v76, 0.0
      %v99 = vadd.f32 %v77, 0.0
      %v100 = vadd.f32 %v78, 0.0
      %v101 = vadd.f32 %v79, 0.0
      %v102 = vadd.f32 %v80, 0.0
      %v103 = vadd.f32 %v81, 0.0
      %v104 = vadd.f32 %v82, 0.0
      %v105 = vadd.f32 %v83, 0.0
      %v106 = vadd.f32 %v90, %v98
      %v107 = vadd.f32 %v91, %v99
      %v108 = vadd.f32 %v92, %v100
      %v109 = vadd.f32 %v93, %v101
      %v110 = vadd.f32 %v94, %v102
      %v111 = vadd.f32 %v95, %v103
      %v112 = vadd.f32 %v96, %v104
      %v113 = vadd.f32 %v97, %v105
      %114 = vst [vmem:[#allocation2] sm:$0xff] %v106
      %115 = vst [vmem:[#allocation2 + $0x8] sm:$0xff] %v107
      %116 = vst [vmem:[#allocation2 + $0x10] sm:$0xff] %v108
      %117 = vst [vmem:[#allocation2 + $0x18] sm:$0xff] %v109
      %118 = vst [vmem:[#allocation2 + $0x20] sm:$0xff] %v110
      %119 = vst [vmem:[#allocation2 + $0x28] sm:$0xff] %v111
      %120 = vst [vmem:[#allocation2 + $0x30] sm:$0xff] %v112
      %121 = vst [vmem:[#allocation2 + $0x38] sm:$0xff] %v113
    $region25: #{tpu_custom_call.1} parent=1 // pred_fallthru
      _
    %p122 = scmp.gt.s32.totalorder %s85, 16
    // Predicated region
    $region26: #{tpu_custom_call.1} parent=1 // pred_check
      %p123 = pneg %p122
    $region27: #{tpu_custom_call.1} parent=1 // pred_check_branch
      %125 = sbr.rel (%p123) target = $region29
    $region28: #{tpu_custom_call.1} parent=1 // pred_region
      %v126 = vlaneseq
      %v127 = vshrl.u32 %v126, 7
      %v128 = vadd.s32 %v127, 8
      %v129 = vadd.s32 %v127, 16
      %v130 = vadd.s32 %v127, 24
      %v131 = vadd.s32 %v127, 32
      %v132 = vadd.s32 %v127, 40
      %v133 = vadd.s32 %v127, 48
      %v134 = vadd.s32 %v127, 56
      %v135 = vstv %s84
      %v136 = vadd.s32 %v135, %v127
      %v137 = vadd.s32 %v135, %v128
      %v138 = vadd.s32 %v135, %v129
      %v139 = vadd.s32 %v135, %v130
      %v140 = vadd.s32 %v135, %v131
      %v141 = vadd.s32 %v135, %v132
      %v142 = vadd.s32 %v135, %v133
      %v143 = vadd.s32 %v135, %v134
      %vm144 = vcmp.lt.s32.totalorder %v136, 16
      %vm145 = vcmp.lt.s32.totalorder %v137, 16
      %vm146 = vcmp.lt.s32.totalorder %v138, 16
      %vm147 = vcmp.lt.s32.totalorder %v139, 16
      %vm148 = vcmp.lt.s32.totalorder %v140, 16
      %vm149 = vcmp.lt.s32.totalorder %v141, 16
      %vm150 = vcmp.lt.s32.totalorder %v142, 16
      %vm151 = vcmp.lt.s32.totalorder %v143, 16
      %v152 = vsel %vm144, %v76, 0.0
      %v153 = vsel %vm145, %v77, 0.0
      %v154 = vsel %vm146, %v78, 0.0
      %v155 = vsel %vm147, %v79, 0.0
      %v156 = vsel %vm148, %v80, 0.0
      %v157 = vsel %vm149, %v81, 0.0
      %v158 = vsel %vm150, %v82, 0.0
      %v159 = vsel %vm151, %v83, 0.0
      %v160 = vld [vmem:[#allocation2] sm:$0xff]
      %v161 = vld [vmem:[#allocation2 + $0x8] sm:$0xff]
      %v162 = vld [vmem:[#allocation2 + $0x10] sm:$0xff]
      %v163 = vld [vmem:[#allocation2 + $0x18] sm:$0xff]
      %v164 = vld [vmem:[#allocation2 + $0x20] sm:$0xff]
      %v165 = vld [vmem:[#allocation2 + $0x28] sm:$0xff]
      %v166 = vld [vmem:[#allocation2 + $0x30] sm:$0xff]
      %v167 = vld [vmem:[#allocation2 + $0x38] sm:$0xff]
      %v168 = vadd.f32 %v152, 0.0
      %v169 = vadd.f32 %v153, 0.0
      %v170 = vadd.f32 %v154, 0.0
      %v171 = vadd.f32 %v155, 0.0
      %v172 = vadd.f32 %v156, 0.0
      %v173 = vadd.f32 %v157, 0.0
      %v174 = vadd.f32 %v158, 0.0
      %v175 = vadd.f32 %v159, 0.0
      %v176 = vadd.f32 %v160, %v168
      %v177 = vadd.f32 %v161, %v169
      %v178 = vadd.f32 %v162, %v170
      %v179 = vadd.f32 %v163, %v171
      %v180 = vadd.f32 %v164, %v172
      %v181 = vadd.f32 %v165, %v173
      %v182 = vadd.f32 %v166, %v174
      %v183 = vadd.f32 %v167, %v175
      %184 = vst [vmem:[#allocation2] sm:$0xff] %v176
      %185 = vst [vmem:[#allocation2 + $0x8] sm:$0xff] %v177
      %186 = vst [vmem:[#allocation2 + $0x10] sm:$0xff] %v178
      %187 = vst [vmem:[#allocation2 + $0x18] sm:$0xff] %v179
      %188 = vst [vmem:[#allocation2 + $0x20] sm:$0xff] %v180
      %189 = vst [vmem:[#allocation2 + $0x28] sm:$0xff] %v181
      %190 = vst [vmem:[#allocation2 + $0x30] sm:$0xff] %v182
      %191 = vst [vmem:[#allocation2 + $0x38] sm:$0xff] %v183
    $region29: #{tpu_custom_call.1} parent=1 // pred_fallthru
      _
    // Predicated region
    $region30: #{tpu_custom_call.1} parent=1 // pred_check
      %p192 = pneg %p40
    $region31: #{tpu_custom_call.1} parent=1 // pred_check_branch
      %194 = sbr.rel (%p192) target = $region33
    $region32: #{tpu_custom_call.1} parent=1 // pred_region
      %v195 = vld [vmem:[#allocation2] sm:$0xff]
      %v196 = vld [vmem:[#allocation2 + $0x8] sm:$0xff]
      %v197 = vld [vmem:[#allocation2 + $0x10] sm:$0xff]
      %v198 = vld [vmem:[#allocation2 + $0x18] sm:$0xff]
      %v199 = vld [vmem:[#allocation2 + $0x20] sm:$0xff]
      %v200 = vld [vmem:[#allocation2 + $0x28] sm:$0xff]
      %v201 = vld [vmem:[#allocation2 + $0x30] sm:$0xff]
      %v202 = vld [vmem:[#allocation2 + $0x38] sm:$0xff]
      %v203 = vadd.f32 %v195, %v196
      %v204 = vadd.f32 %v203, %v197
      %v205 = vadd.f32 %v204, %v198
      %v206 = vadd.f32 %v205, %v199
      %v207 = vadd.f32 %v206, %v200
      %v208 = vadd.f32 %v207, %v201
      %v209 = vadd.f32 %v208, %v202
      %210 = vadd.xlane.f32.xlu0 %v209
      %v211 = vpop.xlane.xlu0 %210
      %v212 = vrot.slane %v211, 4
      %v213 = vadd.f32 %v211, %v212
      %v214 = vrot.slane %v213, 2
      %v215 = vadd.f32 %v213, %v214
      %v216 = vrot.slane %v215, 1
      %v217 = vadd.f32 %v215, %v216
      %s218 = vtos %v217
      %s219 = scalar_lea.smem [#allocation8], 0
      %220 = sst [smem:[%s219]] %s218
    $region33: #{tpu_custom_call.1} parent=1 // pred_fallthru
      _
    // Predicated region
    $region34: #{tpu_custom_call.1} parent=1 // pred_check
      _
    $region35: #{tpu_custom_call.1} parent=1 // pred_check_branch
      %222 = sbr.rel (0) target = $region37
    $region36: #{tpu_custom_call.1} parent=1 // pred_region
      %s224 = ssub.s32 16, 16
      %225 = vsyncadd [#allocation5], %s224
      %228 = dma.smem_to_hbm [#allocation8], 16, %s2, [#allocation5]
    $region37: #{tpu_custom_call.1} parent=1 // pred_fallthru
      _
    // Predicated region
    $region38: #{tpu_custom_call.1} parent=1 // pred_check
      _
    $region39: #{tpu_custom_call.1} parent=1 // pred_check_branch
      %230 = sbr.rel (0) target = $region41
    $region40: #{tpu_custom_call.1} parent=1 // pred_region
      %231 = dma.done [#allocation5], 16
    $region41: #{tpu_custom_call.1} parent=1 // pred_fallthru
      _
    %232 = sfence
    %233 = vsyncpa [#allocation4], 1
    %234 = vsyncpa [#allocation7], 1
    %235 = vsyncpa [#allocation5], 1

</llo_original>
